<compile_context>
chip_gen: v5e
topology: v5e:2x2
jax: 0.10.0
libtpu: 0.0.40
codegen_flags: <defaults>
</compile_context>

<pallas_src>
import functools

import jax
import jax.numpy as jnp
from jax.experimental import pallas as pl
from jax.experimental.pallas import tpu as pltpu


def _round_up(a, b):
    return (a + b - 1) // b * b


def _cdiv(a, b):
    return (a + b - 1) // b


def _device_kind():
    try:
        return jax.devices()[0].device_kind.lower()
    except Exception:
        return ""


def _gap_sum_kernel(x_ref, o_ref, acc_ref, *, inv_hw, tail):
    # x_ref : (rt, ht) tile of the (R, H*W) view; rows on sublanes, spatial on lanes
    # o_ref : (rt, 1) output block (resident across the reduction axis)
    # acc_ref: (rt, 1) f32 accumulator scratch
    # tail  : static int; if nonzero, only the first `tail` lanes of the LAST
    #         reduction chunk are valid (the block overhangs H*W).
    j = pl.program_id(1)                 # reduction-chunk index (last, "arbitrary")
    nj = pl.num_programs(1)

    @pl.when(j == 0)
    def _init():
        acc_ref[...] = jnp.zeros_like(acc_ref)

    x = x_ref[...]

    if tail == 0:
        # Every chunk is fully valid (single full-dim chunk, or HW % ht == 0).
        acc_ref[...] += jnp.sum(x, axis=-1, keepdims=True, dtype=jnp.float32)
    else:
        @pl.when(j < nj - 1)
        def _full_chunk():
            acc_ref[...] += jnp.sum(x, axis=-1, keepdims=True, dtype=jnp.float32)

        @pl.when(j == nj - 1)
        def _tail_chunk():
            lane = jax.lax.broadcasted_iota(jnp.int32, x.shape, 1)
            xm = jnp.where(lane < tail, x, jnp.zeros_like(x))
            acc_ref[...] += jnp.sum(xm, axis=-1, keepdims=True, dtype=jnp.float32)

    @pl.when(j == nj - 1)
    def _finalize():
        o_ref[...] = (acc_ref[...] * inv_hw).astype(o_ref.dtype)


def global_avg_pool_2d(x, *, target_block_bytes=None):
    """x: (N, C, H, W) -> (N, C), mean over spatial dims (== F.avg_pool2d(x, (H, W)))."""
    N, C, H, W = x.shape
    R = N * C
    HW = H * W
    itemsize = jnp.dtype(x.dtype).itemsize

    kind = _device_kind()
    if target_block_bytes is None:
        if "v5" in kind:
            target_block_bytes = 2 * 1024 * 1024   # v5e: 16 MiB scoped VMEM, slower HBM
        elif "v6" in kind:
            target_block_bytes = 4 * 1024 * 1024
        elif "7" in kind:
            target_block_bytes = 8 * 1024 * 1024   # v7x: amortize ~0.35us/step vs 3.2 TB/s
        else:
            target_block_bytes = 2 * 1024 * 1024   # conservative default
    split_rows = ("7" in kind) and ("v5" not in kind) and ("v6" not in kind)

    # Free view for contiguous NCHW: rows = (n, c), cols = flattened spatial
    # (lane-dense reduction axis). No padding copy.
    x2 = x.reshape(R, HW)

    if HW * 8 * itemsize <= target_block_bytes:
        # --- Common path: whole spatial extent as ONE full-dim lane chunk. ---
        ht = HW                                   # == full dim -> exempt from 128 rule
        tail = 0
        rows_budget = max(8, (target_block_bytes // (HW * itemsize)) // 8 * 8)
        rt = R if R <= 8 else min(_round_up(R, 8), rows_budget)
        if split_rows and R > 8:
            # v7x: give both TensorCores at least one row block.
            rt = min(rt, _round_up(_cdiv(R, 2), 8))
    else:
        # --- Large-HW path: 128-multiple chunks, mask the static tail. ---
        rt = R if R < 8 else 8
        ht_budget = max(128, (target_block_bytes // (rt * itemsize)) // 128 * 128)
        ht = min(_round_up(HW, 128), ht_budget)
        tail = HW % ht                            # 0 if it divides evenly

    grid = (_cdiv(R, rt), _cdiv(HW, ht))

    in_spec_kwargs = {}
    if grid[1] >= 3:
        # Tiny per-chunk compute; a third buffer hides DMA issue latency.
        in_spec_kwargs["pipeline_mode"] = pl.Buffered(3)

    out = pl.pallas_call(
        functools.partial(_gap_sum_kernel, inv_hw=1.0 / float(HW), tail=tail),
        out_shape=jax.ShapeDtypeStruct((R, 1), x.dtype),
        grid_spec=pltpu.PrefetchScalarGridSpec(
            num_scalar_prefetch=0,
            grid=grid,
            in_specs=[pl.BlockSpec((rt, ht), lambda i, j: (i, j), **in_spec_kwargs)],
            out_specs=pl.BlockSpec((rt, 1), lambda i, j: (i, 0)),
            scratch_shapes=[pltpu.VMEM((rt, 1), jnp.float32)],
        ),
        compiler_params=pltpu.CompilerParams(
            dimension_semantics=("parallel", "arbitrary"),
        ),
        cost_estimate=pl.CostEstimate(
            flops=R * HW,
            transcendentals=0,
            bytes_accessed=R * HW * itemsize + R * itemsize,
        ),
    )(x2)

    return out[:, 0].reshape(N, C)


def _ref_gap(x):
    xf = x.astype(jnp.float32)
    return jnp.mean(xf.reshape(x.shape[0], x.shape[1], -1), axis=2)


if __name__ == "__main__":
    key = jax.random.PRNGKey(0)

    # 1) Shape implied by the module / previous test: tiny, single tile per axis.
    x = jax.random.normal(key, (2, 4, 16, 16), dtype=jnp.float32)
    out = jax.block_until_ready(global_avg_pool_2d(x))
    assert out.shape == (2, 4), out.shape
    assert jnp.allclose(out, _ref_gap(x), atol=1e-5, rtol=1e-4)

    # 2) feat32-like shape: HW=144 taken as a single full-dim chunk (no padding),
    #    row axis tiled (and split across cores on v7x).
    k2 = jax.random.PRNGKey(1)
    x2 = jax.random.normal(k2, (2, 512, 12, 12), dtype=jnp.float32)
    out2 = jax.block_until_ready(global_avg_pool_2d(x2))
    assert out2.shape == (2, 512)
    assert jnp.allclose(out2, _ref_gap(x2), atol=1e-5, rtol=1e-4)

    # 3) bf16 input path (f32 accumulation inside the kernel; byte-based tiling).
    k3 = jax.random.PRNGKey(2)
    x3 = jax.random.normal(k3, (2, 128, 16, 16), dtype=jnp.bfloat16)
    out3 = jax.block_until_ready(global_avg_pool_2d(x3))
    assert out3.shape == (2, 128)
    assert jnp.allclose(out3.astype(jnp.float32), _ref_gap(x3), atol=1e-2, rtol=1e-2)

    # 4) Force the chunked-HW path (small target block) to exercise the masked
    #    tail chunk and Buffered(3): HW=5000 -> chunks of 2048, tail=904.
    k4 = jax.random.PRNGKey(3)
    x4 = jax.random.normal(k4, (2, 8, 50, 100), dtype=jnp.float32)
    out4 = jax.block_until_ready(global_avg_pool_2d(x4, target_block_bytes=64 * 1024))
    assert out4.shape == (2, 8)
    assert jnp.allclose(out4, _ref_gap(x4), atol=1e-5, rtol=1e-4)

    print("KERNEL_OK")
</pallas_src>

<mosaic_0001>
module attributes {stable_mosaic.version = 11 : i64} {
  func.func @_gap_sum_kernel(%arg0: i32, %arg1: i32, %arg2: memref<8x256xf32, #tpu.memory_space<vmem>>, %arg3: memref<8x1xf32, #tpu.memory_space<vmem>>, %arg4: memref<8x1xf32, #tpu.memory_space<vmem>>) attributes {dimension_semantics = [#tpu.dimension_semantics<parallel>, #tpu.dimension_semantics<arbitrary>], iteration_bounds = array<i64: 1, 1>, scalar_prefetch = 0 : i64, scratch_operands = 1 : i64, tpu.core_type = #tpu.core_type<tc>, window_params = [{transform_indices = @transform_0, window_bounds = array<i64: 8, 256>}, {transform_indices = @transform_1, window_bounds = array<i64: 8, 1>}]} {
    %c0_i32 = arith.constant 0 : i32
    %0 = arith.cmpi eq, %arg1, %c0_i32 : i32
    %1 = arith.extui %0 : i1 to i32
    %c0_i32_0 = arith.constant 0 : i32
    %2 = arith.cmpi ne, %1, %c0_i32_0 : i32
    scf.if %2 {
      %cst_8 = arith.constant 0.000000e+00 : f32
      %12 = vector.broadcast %cst_8 : f32 to vector<8x1xf32>
      %c0_9 = arith.constant 0 : index
      %c0_10 = arith.constant 0 : index
      %13 = vector.load %arg4[%c0_9, %c0_10] : memref<8x1xf32, #tpu.memory_space<vmem>>, vector<8x1xf32>
      tpu.vector_store %arg4[%c0_9, %c0_10], %12 {strides = array<i32>} : memref<8x1xf32, #tpu.memory_space<vmem>>, vector<8x1xf32>,
    } else {
    }
    %c0 = arith.constant 0 : index
    %c0_1 = arith.constant 0 : index
    %3 = vector.load %arg2[%c0, %c0_1] : memref<8x256xf32, #tpu.memory_space<vmem>>, vector<8x256xf32>
    %c0_2 = arith.constant 0 : index
    %c0_3 = arith.constant 0 : index
    %4 = vector.load %arg4[%c0_2, %c0_3] : memref<8x1xf32, #tpu.memory_space<vmem>>, vector<8x1xf32>
    %cst = arith.constant dense<0.000000e+00> : vector<8xf32>
    %5 = vector.multi_reduction <add>, %3, %cst [1] : vector<8x256xf32> to vector<8xf32>
    %6 = vector.shape_cast %5 : vector<8xf32> to vector<8x1xf32>
    %7 = arith.addf %4, %6 : vector<8x1xf32>
    %c0_4 = arith.constant 0 : index
    %c0_5 = arith.constant 0 : index
    %8 = vector.load %arg4[%c0_4, %c0_5] : memref<8x1xf32, #tpu.memory_space<vmem>>, vector<8x1xf32>
    tpu.vector_store %arg4[%c0_4, %c0_5], %7 {strides = array<i32>} : memref<8x1xf32, #tpu.memory_space<vmem>>, vector<8x1xf32>,
    %c0_i32_6 = arith.constant 0 : i32
    %9 = arith.cmpi eq, %arg1, %c0_i32_6 : i32
    %10 = arith.extui %9 : i1 to i32
    %c0_i32_7 = arith.constant 0 : i32
    %11 = arith.cmpi ne, %10, %c0_i32_7 : i32
    scf.if %11 {
      %c0_8 = arith.constant 0 : index
      %c0_9 = arith.constant 0 : index
      %12 = vector.load %arg4[%c0_8, %c0_9] : memref<8x1xf32, #tpu.memory_space<vmem>>, vector<8x1xf32>
      %cst_10 = arith.constant 3.906250e-03 : f32
      %13 = vector.broadcast %cst_10 : f32 to vector<8x1xf32>
      %14 = arith.mulf %12, %13 : vector<8x1xf32>
      %c0_11 = arith.constant 0 : index
      %c0_12 = arith.constant 0 : index
      %15 = vector.load %arg3[%c0_11, %c0_12] : memref<8x1xf32, #tpu.memory_space<vmem>>, vector<8x1xf32>
      tpu.vector_store %arg3[%c0_11, %c0_12], %14 {strides = array<i32>} : memref<8x1xf32, #tpu.memory_space<vmem>>, vector<8x1xf32>,
    } else {
    }
    return
  }
  func.func @transform_0(%arg0: i32, %arg1: i32) -> (i32, i32) {
    %c0_i32 = arith.constant 0 : i32
    return %arg0, %arg1 : i32, i32
  }
  func.func @transform_1(%arg0: i32, %arg1: i32) -> (i32, i32) {
    %c0_i32 = arith.constant 0 : i32
    %c0_i32_0 = arith.constant 0 : i32
    return %arg0, %c0_i32 : i32, i32
  }
}

</mosaic_0001>

<llo_original>
// kernel: tpu_custom_call.1
$region0: #{tpu_custom_call.1}
  #allocation0 [shape = 'u32[]', space=smem, size = 0x4, offset = 0x4, fixed_abs, tag = 'smem constant byte address 0x4 - core index']
  #allocation1 [shape = 'u32[72,128]{1,0:T(1,128)}', space=vmem, size = 0x9000, scoped, tag = 'internal scratch']
  #allocation2 [shape = 'f32[8,1]{1,0:T(8,128)}', space=vmem, size = 0x1000, scoped, tag = 'scratch operand']
  %s0 = inlined_call_operand.hbm [shape: f32[8,256], index: 0, kind: input, shape index: {}]
  %s1 = inlined_call_operand.vmem [shape: f32[8,1], index: 1, kind: output, shape index: {}]
  %s2 = sld [smem:[#allocation0]]
  $region26: #{tpu_custom_call.1} parent=0
    _
  %s4 = ssub.s32 1, %s2
  %s5 = scalar_select 0, %s4, %s2
  $region1: #{tpu_custom_call.1} parent=0
    #allocation3 [shape = 'u8[8192]{0}', space=vmem, size = 0x2000, scoped, tag = 'input window, operand 0, single buffered']
    #allocation4 [shape = 's32[1]{0}', space=sflag, size = 0x4, scoped, tag = 'scoped memory for tpu_custom_call.1']
    %6 = vsyncpa [#allocation4], 0
    // Predicated region
    $region2: #{tpu_custom_call.1} parent=1 // pred_check
      _
    $region3: #{tpu_custom_call.1} parent=1 // pred_check_branch
      %8 = sbr.rel (0) target = $region5
    $region4: #{tpu_custom_call.1} parent=1 // pred_region
      %10 = vsyncadd [#allocation4], 0
      %s12 = sshll.u32 %s0, 4
      %s13 = int_to_ptr.hbm [resolvable:$true] %s12
      %s14 = sshll.u32 [#allocation3], 4
      %s15 = int_to_ptr.vmem [resolvable:$true] %s14
      %17 = dma.hbm_to_vmem [thread:$0]  %s13, 256, %s15, [#allocation4]
    $region5: #{tpu_custom_call.1} parent=1 // pred_fallthru
      _
    // Predicated region
    $region6: #{tpu_custom_call.1} parent=1 // pred_check
      _
    $region7: #{tpu_custom_call.1} parent=1 // pred_check_branch
      %19 = sbr.rel (0) target = $region9
    $region8: #{tpu_custom_call.1} parent=1 // pred_region
      %21 = dma.done [#allocation4], 256
    $region9: #{tpu_custom_call.1} parent=1 // pred_fallthru
      _
    %p22 = scmp.eq.s32.totalorder 0, 0
    // Predicated region
    $region10: #{tpu_custom_call.1} parent=1 // pred_check
      %p23 = pneg %p22
    $region11: #{tpu_custom_call.1} parent=1 // pred_check_branch
      %25 = sbr.rel (%p23) target = $region13
    $region12: #{tpu_custom_call.1} parent=1 // pred_region
      %vm26 = vcmask 7168
      %27 = vst.msk [vmem:[#allocation2] sm:$0xff] %vm26, 0.0
    $region13: #{tpu_custom_call.1} parent=1 // pred_fallthru
      _
    %v28 = vld [vmem:[#allocation3] sm:$0xff]
    %v29 = vld [vmem:[#allocation3 + $0x8] sm:$0xff]
    %v30 = vld [vmem:[#allocation2] sm:$0xff]
    %v31 = vadd.f32 %v28, %v29
    %32 = vadd.xlane.f32.xlu0 %v31
    %v33 = vpop.xlane.xlu0 %32
    %v34 = vadd.f32 %v30, %v33
    %vm35 = vcmask 7168
    %36 = vst.msk [vmem:[#allocation2] sm:$0xff] %vm35, %v34
    // Predicated region
    $region14: #{tpu_custom_call.1} parent=1 // pred_check
      %p37 = pneg %p22
    $region15: #{tpu_custom_call.1} parent=1 // pred_check_branch
      %39 = sbr.rel (%p37) target = $region17
    $region16: #{tpu_custom_call.1} parent=1 // pred_region
      %v40 = vld [vmem:[#allocation2] sm:$0xff]
      %v41 = vmul.f32 %v40, 0.00390625
      %42 = vst.msk [vmem:[%s1] sm:$0xff] %vm35, %v41
    $region17: #{tpu_custom_call.1} parent=1 // pred_fallthru
      _
    // Predicated region
    $region18: #{tpu_custom_call.1} parent=1 // pred_check
      _
    $region19: #{tpu_custom_call.1} parent=1 // pred_check_branch
      %44 = sbr.rel (0) target = $region21
    $region20: #{tpu_custom_call.1} parent=1 // pred_region
      _
    $region21: #{tpu_custom_call.1} parent=1 // pred_fallthru
      _
    // Predicated region
    $region22: #{tpu_custom_call.1} parent=1 // pred_check
      _
    $region23: #{tpu_custom_call.1} parent=1 // pred_check_branch
      %46 = sbr.rel (0) target = $region25
    $region24: #{tpu_custom_call.1} parent=1 // pred_region
      _
    $region25: #{tpu_custom_call.1} parent=1 // pred_fallthru
      _
    %47 = vsyncpa [#allocation4], 1

</llo_original>
